<compile_context>
chip_gen: v7x
topology: tpu7x:2x2x1
jax: 0.10.0
libtpu: 0.0.40
codegen_flags: <defaults>
</compile_context>

<pallas_src>
import jax
import jax.numpy as jnp
from jax.experimental import pallas as pl
from jax.experimental.pallas import tpu as pltpu


def _elu(x):
    # F.elu with alpha=1.0: x if x > 0 else exp(x) - 1.
    # Clamp the exp argument so the untaken branch never produces inf.
    return jnp.where(x > 0, x, jnp.exp(jnp.minimum(x, 0.0)) - 1.0)


def reward_model_kernel(s_ref, rh_ref,
                        w1a_ref, w1b_ref, b1_ref,
                        w2_ref, b2_ref,
                        w3_ref, b3_ref,
                        w4_ref, b4_ref,
                        out_ref):
    """Fused 4-layer MLP with ELU activations over one batch tile."""
    cdt = w2_ref.dtype  # matmul operand dtype (f32 or bf16); accumulation is f32.

    # Layer 1: implicit concat -> two small dots summed (same MXU work, no
    # HBM round-trip for the concatenated activation).
    h = (jnp.dot(s_ref[...], w1a_ref[...], preferred_element_type=jnp.float32)
         + jnp.dot(rh_ref[...], w1b_ref[...], preferred_element_type=jnp.float32)
         + b1_ref[...])
    h = _elu(h)

    h = jnp.dot(h.astype(cdt), w2_ref[...],
                preferred_element_type=jnp.float32) + b2_ref[...]
    h = _elu(h)

    h = jnp.dot(h.astype(cdt), w3_ref[...],
                preferred_element_type=jnp.float32) + b3_ref[...]
    h = _elu(h)

    # fc4 has a single output feature: use a VPU multiply + lane reduce instead
    # of a 1-lane MXU matmul (XLU slot is otherwise idle here).
    reward = jnp.sum(h * w4_ref[...], axis=-1, keepdims=True) + b4_ref[...]
    out_ref[...] = reward.astype(out_ref.dtype)


def _round_up(x, m):
    return -(-x // m) * m


def reward_model_forward(state, rnn_hidden, params, *, tm=2048, matmul_dtype=None):
    """Returns the mean of the predicted reward Normal distribution, shape (B, 1).

    TODO(synk): td.Independent(td.Normal(reward, 1), 1) is a distribution
    object, not a tensor op; this returns its mean (std == 1 is fixed).
    """
    B, state_dim = state.shape
    rnn_hidden_dim = rnn_hidden.shape[1]
    (w1, b1, w2, b2, w3, b3, w4, b4) = params
    in_dim, hidden_dim = w1.shape

    # Split W1 so the concat can be fused into the first layer; flatten W4 to a
    # (1, hidden) row for the VPU+reduce final layer.
    w1a = w1[:state_dim]              # (state_dim, hidden)
    w1b = w1[state_dim:]              # (rnn_hidden_dim, hidden)
    w4_row = w4.reshape(1, hidden_dim)

    # Optional bf16 matmul operands (v6e/v7x DMA saving). Accumulation, biases
    # and ELU stay f32.
    if matmul_dtype is not None:
        state = state.astype(matmul_dtype)
        rnn_hidden = rnn_hidden.astype(matmul_dtype)
        w1a = w1a.astype(matmul_dtype)
        w1b = w1b.astype(matmul_dtype)
        w2m = w2.astype(matmul_dtype)
        w3m = w3.astype(matmul_dtype)
    else:
        w2m, w3m = w2, w3

    # Batch tile: big (per-step overhead amortization), multiple of 8 sublanes,
    # but capped at ~ceil(B/2) so the grid has >=2 steps (v7x dual TC).
    TM = min(tm, max(8, _round_up(-(-B // 2), 8)))
    if TM > B:
        TM = B  # tiny batch: single whole-array block, no padding needed.
    grid = (pl.cdiv(B, TM),)  # ragged last block handled by Pallas (no jnp.pad).

    def row_spec(a):
        # Batch-tiled input: block i along the batch axis.
        return pl.BlockSpec((TM, a.shape[1]), lambda i: (i, 0))

    def const_spec(a):
        # Weights/biases: same block every grid step -> stay resident in VMEM.
        return pl.BlockSpec(a.shape, lambda i: (0,) * a.ndim)

    param_bytes = sum(int(a.size) * a.dtype.itemsize
                      for a in (w1a, w1b, b1, w2m, b2, w3m, b3, w4_row, b4))
    act_bytes = (int(state.size) * state.dtype.itemsize
                 + int(rnn_hidden.size) * rnn_hidden.dtype.itemsize
                 + B * 4)
    cost = pl.CostEstimate(
        flops=2 * B * (in_dim * hidden_dim
                       + 2 * hidden_dim * hidden_dim
                       + hidden_dim),
        transcendentals=3 * B * hidden_dim,
        bytes_accessed=act_bytes + param_bytes,
    )

    out = pl.pallas_call(
        reward_model_kernel,
        out_shape=jax.ShapeDtypeStruct((B, 1), jnp.float32),
        grid=grid,
        in_specs=[row_spec(state), row_spec(rnn_hidden),
                  const_spec(w1a), const_spec(w1b), const_spec(b1),
                  const_spec(w2m), const_spec(b2),
                  const_spec(w3m), const_spec(b3),
                  const_spec(w4_row), const_spec(b4)],
        out_specs=pl.BlockSpec((TM, 1), lambda i: (i, 0)),
        compiler_params=pltpu.CompilerParams(
            dimension_semantics=("parallel",)),
        cost_estimate=cost,
    )(state, rnn_hidden, w1a, w1b, b1, w2m, b2, w3m, b3, w4_row, b4)

    return out


def init_params(key, state_dim, rnn_hidden_dim, hidden_dim):
    """Deterministic parameter init (shapes match the PyTorch module)."""
    in_dim = state_dim + rnn_hidden_dim
    ks = jax.random.split(key, 8)

    def lin(kw, kb, fan_in, fan_out):
        # Uniform(-1/sqrt(fan_in), 1/sqrt(fan_in)) like torch.nn.Linear default.
        bound = 1.0 / jnp.sqrt(jnp.float32(fan_in))
        w = jax.random.uniform(kw, (fan_in, fan_out), jnp.float32, -bound, bound)
        b = jax.random.uniform(kb, (1, fan_out), jnp.float32, -bound, bound)
        return w, b

    w1, b1 = lin(ks[0], ks[1], in_dim, hidden_dim)
    w2, b2 = lin(ks[2], ks[3], hidden_dim, hidden_dim)
    w3, b3 = lin(ks[4], ks[5], hidden_dim, hidden_dim)
    w4, b4 = lin(ks[6], ks[7], hidden_dim, 1)
    return (w1, b1, w2, b2, w3, b3, w4, b4)


def reference_forward(state, rnn_hidden, params):
    """Pure-JAX reference for correctness checking."""
    (w1, b1, w2, b2, w3, b3, w4, b4) = params
    x = jnp.concatenate([state, rnn_hidden], axis=-1)
    h = _elu(x @ w1 + b1)
    h = _elu(h @ w2 + b2)
    h = _elu(h @ w3 + b3)
    return h @ w4 + b4


if __name__ == "__main__":
    # Small shapes consistent with the module's forward.
    state_dim = 8
    rnn_hidden_dim = 24
    hidden_dim = 32

    key = jax.random.PRNGKey(0)
    k_state, k_hidden, k_params = jax.random.split(key, 3)
    params = init_params(k_params, state_dim, rnn_hidden_dim, hidden_dim)

    # Case 1: tiny batch -> single whole-array block (B < 8).
    B = 2
    state = jax.random.normal(k_state, (B, state_dim), jnp.float32)
    rnn_hidden = jax.random.normal(k_hidden, (B, rnn_hidden_dim), jnp.float32)
    reward_mean = reward_model_forward(state, rnn_hidden, params)
    jax.block_until_ready(reward_mean)
    ref = reference_forward(state, rnn_hidden, params)
    assert reward_mean.shape == (B, 1)
    assert jnp.allclose(reward_mean, ref, atol=1e-5, rtol=1e-5), (reward_mean, ref)

    # Case 2: two equal grid steps (v7x dual-core-friendly split), no padding.
    B2 = 272
    state2 = jax.random.normal(jax.random.PRNGKey(1), (B2, state_dim), jnp.float32)
    rnn_hidden2 = jax.random.normal(jax.random.PRNGKey(2), (B2, rnn_hidden_dim), jnp.float32)
    reward_mean2 = reward_model_forward(state2, rnn_hidden2, params)
    jax.block_until_ready(reward_mean2)
    ref2 = reference_forward(state2, rnn_hidden2, params)
    assert reward_mean2.shape == (B2, 1)
    assert jnp.allclose(reward_mean2, ref2, atol=1e-5, rtol=1e-5)

    # Case 3: ragged last tile (B % TM != 0) with no wrapper-side padding.
    B3 = 300
    state3 = jax.random.normal(jax.random.PRNGKey(3), (B3, state_dim), jnp.float32)
    rnn_hidden3 = jax.random.normal(jax.random.PRNGKey(4), (B3, rnn_hidden_dim), jnp.float32)
    reward_mean3 = reward_model_forward(state3, rnn_hidden3, params, tm=128)
    jax.block_until_ready(reward_mean3)
    ref3 = reference_forward(state3, rnn_hidden3, params)
    assert reward_mean3.shape == (B3, 1)
    assert jnp.allclose(reward_mean3, ref3, atol=1e-5, rtol=1e-5)

    # Case 4: bf16 matmul operands (v6e/v7x input-DMA saving); looser tolerance.
    reward_mean4 = reward_model_forward(state2, rnn_hidden2, params,
                                        matmul_dtype=jnp.bfloat16)
    jax.block_until_ready(reward_mean4)
    assert reward_mean4.shape == (B2, 1)
    assert jnp.allclose(reward_mean4, ref2, atol=5e-2, rtol=5e-2)

    print("KERNEL_OK")
</pallas_src>

<mosaic_0001>
module attributes {stable_mosaic.version = 11 : i64} {
  func.func @reward_model_kernel(%arg0: i32, %arg1: memref<2x8xf32, #tpu.memory_space<vmem>>, %arg2: memref<2x24xf32, #tpu.memory_space<vmem>>, %arg3: memref<8x32xf32, #tpu.memory_space<vmem>>, %arg4: memref<24x32xf32, #tpu.memory_space<vmem>>, %arg5: memref<1x32xf32, #tpu.memory_space<vmem>>, %arg6: memref<32x32xf32, #tpu.memory_space<vmem>>, %arg7: memref<1x32xf32, #tpu.memory_space<vmem>>, %arg8: memref<32x32xf32, #tpu.memory_space<vmem>>, %arg9: memref<1x32xf32, #tpu.memory_space<vmem>>, %arg10: memref<1x32xf32, #tpu.memory_space<vmem>>, %arg11: memref<1x1xf32, #tpu.memory_space<vmem>>, %arg12: memref<2x1xf32, #tpu.memory_space<vmem>>) attributes {dimension_semantics = [#tpu.dimension_semantics<parallel>], iteration_bounds = array<i64: 1>, scalar_prefetch = 0 : i64, scratch_operands = 0 : i64, tpu.core_type = #tpu.core_type<tc>, window_params = [{transform_indices = @transform_0, window_bounds = array<i64: 2, 8>}, {transform_indices = @transform_1, window_bounds = array<i64: 2, 24>}, {pipeline_mode = #tpu.pipeline_mode<synchronous>, transform_indices = @transform_2, window_bounds = array<i64: 8, 32>}, {pipeline_mode = #tpu.pipeline_mode<synchronous>, transform_indices = @transform_3, window_bounds = array<i64: 24, 32>}, {pipeline_mode = #tpu.pipeline_mode<synchronous>, transform_indices = @transform_4, window_bounds = array<i64: 1, 32>}, {pipeline_mode = #tpu.pipeline_mode<synchronous>, transform_indices = @transform_5, window_bounds = array<i64: 32, 32>}, {pipeline_mode = #tpu.pipeline_mode<synchronous>, transform_indices = @transform_6, window_bounds = array<i64: 1, 32>}, {pipeline_mode = #tpu.pipeline_mode<synchronous>, transform_indices = @transform_7, window_bounds = array<i64: 32, 32>}, {pipeline_mode = #tpu.pipeline_mode<synchronous>, transform_indices = @transform_8, window_bounds = array<i64: 1, 32>}, {pipeline_mode = #tpu.pipeline_mode<synchronous>, transform_indices = @transform_9, window_bounds = array<i64: 1, 32>}, {pipeline_mode = #tpu.pipeline_mode<synchronous>, transform_indices = @transform_10, window_bounds = array<i64: 1, 1>}, {transform_indices = @transform_11, window_bounds = array<i64: 2, 1>}]} {
    %c0 = arith.constant 0 : index
    %c0_0 = arith.constant 0 : index
    %0 = vector.load %arg1[%c0, %c0_0] : memref<2x8xf32, #tpu.memory_space<vmem>>, vector<2x8xf32>
    %c0_1 = arith.constant 0 : index
    %c0_2 = arith.constant 0 : index
    %1 = vector.load %arg3[%c0_1, %c0_2] : memref<8x32xf32, #tpu.memory_space<vmem>>, vector<8x32xf32>
    %cst = arith.constant dense<0.000000e+00> : vector<2x32xf32>
    %2 = tpu.matmul %0, %1, %cst {dimension_numbers = #tpu.dot_dimension_numbers<[1], [0], [0], [1], [0, 0, 1, 1], [], []>} : vector<2x8xf32>, vector<8x32xf32>, vector<2x32xf32> -> vector<2x32xf32>
    %c0_3 = arith.constant 0 : index
    %c0_4 = arith.constant 0 : index
    %3 = vector.load %arg2[%c0_3, %c0_4] : memref<2x24xf32, #tpu.memory_space<vmem>>, vector<2x24xf32>
    %c0_5 = arith.constant 0 : index
    %c0_6 = arith.constant 0 : index
    %4 = vector.load %arg4[%c0_5, %c0_6] : memref<24x32xf32, #tpu.memory_space<vmem>>, vector<24x32xf32>
    %cst_7 = arith.constant dense<0.000000e+00> : vector<2x32xf32>
    %5 = tpu.matmul %3, %4, %cst_7 {dimension_numbers = #tpu.dot_dimension_numbers<[1], [0], [0], [1], [0, 0, 1, 1], [], []>} : vector<2x24xf32>, vector<24x32xf32>, vector<2x32xf32> -> vector<2x32xf32>
    %6 = arith.addf %2, %5 : vector<2x32xf32>
    %c0_8 = arith.constant 0 : index
    %c0_9 = arith.constant 0 : index
    %7 = vector.load %arg5[%c0_8, %c0_9] : memref<1x32xf32, #tpu.memory_space<vmem>>, vector<1x32xf32>
    %8 = vector.broadcast %7 : vector<1x32xf32> to vector<2x32xf32>
    %9 = arith.addf %6, %8 : vector<2x32xf32>
    %cst_10 = arith.constant 0.000000e+00 : f32
    %10 = vector.broadcast %cst_10 : f32 to vector<2x32xf32>
    %11 = arith.cmpf ogt, %9, %10 : vector<2x32xf32>
    %cst_11 = arith.constant 0.000000e+00 : f32
    %12 = vector.broadcast %cst_11 : f32 to vector<2x32xf32>
    %13 = arith.minimumf %9, %12 : vector<2x32xf32>
    %14 = math.exp %13 : vector<2x32xf32>
    %cst_12 = arith.constant 1.000000e+00 : f32
    %15 = vector.broadcast %cst_12 : f32 to vector<2x32xf32>
    %16 = arith.subf %14, %15 : vector<2x32xf32>
    %17 = arith.select %11, %9, %16 : vector<2x32xi1>, vector<2x32xf32>
    %c0_13 = arith.constant 0 : index
    %c0_14 = arith.constant 0 : index
    %18 = vector.load %arg6[%c0_13, %c0_14] : memref<32x32xf32, #tpu.memory_space<vmem>>, vector<32x32xf32>
    %cst_15 = arith.constant dense<0.000000e+00> : vector<2x32xf32>
    %19 = tpu.matmul %17, %18, %cst_15 {dimension_numbers = #tpu.dot_dimension_numbers<[1], [0], [0], [1], [0, 0, 1, 1], [], []>} : vector<2x32xf32>, vector<32x32xf32>, vector<2x32xf32> -> vector<2x32xf32>
    %c0_16 = arith.constant 0 : index
    %c0_17 = arith.constant 0 : index
    %20 = vector.load %arg7[%c0_16, %c0_17] : memref<1x32xf32, #tpu.memory_space<vmem>>, vector<1x32xf32>
    %21 = vector.broadcast %20 : vector<1x32xf32> to vector<2x32xf32>
    %22 = arith.addf %19, %21 : vector<2x32xf32>
    %cst_18 = arith.constant 0.000000e+00 : f32
    %23 = vector.broadcast %cst_18 : f32 to vector<2x32xf32>
    %24 = arith.cmpf ogt, %22, %23 : vector<2x32xf32>
    %cst_19 = arith.constant 0.000000e+00 : f32
    %25 = vector.broadcast %cst_19 : f32 to vector<2x32xf32>
    %26 = arith.minimumf %22, %25 : vector<2x32xf32>
    %27 = math.exp %26 : vector<2x32xf32>
    %cst_20 = arith.constant 1.000000e+00 : f32
    %28 = vector.broadcast %cst_20 : f32 to vector<2x32xf32>
    %29 = arith.subf %27, %28 : vector<2x32xf32>
    %30 = arith.select %24, %22, %29 : vector<2x32xi1>, vector<2x32xf32>
    %c0_21 = arith.constant 0 : index
    %c0_22 = arith.constant 0 : index
    %31 = vector.load %arg8[%c0_21, %c0_22] : memref<32x32xf32, #tpu.memory_space<vmem>>, vector<32x32xf32>
    %cst_23 = arith.constant dense<0.000000e+00> : vector<2x32xf32>
    %32 = tpu.matmul %30, %31, %cst_23 {dimension_numbers = #tpu.dot_dimension_numbers<[1], [0], [0], [1], [0, 0, 1, 1], [], []>} : vector<2x32xf32>, vector<32x32xf32>, vector<2x32xf32> -> vector<2x32xf32>
    %c0_24 = arith.constant 0 : index
    %c0_25 = arith.constant 0 : index
    %33 = vector.load %arg9[%c0_24, %c0_25] : memref<1x32xf32, #tpu.memory_space<vmem>>, vector<1x32xf32>
    %34 = vector.broadcast %33 : vector<1x32xf32> to vector<2x32xf32>
    %35 = arith.addf %32, %34 : vector<2x32xf32>
    %cst_26 = arith.constant 0.000000e+00 : f32
    %36 = vector.broadcast %cst_26 : f32 to vector<2x32xf32>
    %37 = arith.cmpf ogt, %35, %36 : vector<2x32xf32>
    %cst_27 = arith.constant 0.000000e+00 : f32
    %38 = vector.broadcast %cst_27 : f32 to vector<2x32xf32>
    %39 = arith.minimumf %35, %38 : vector<2x32xf32>
    %40 = math.exp %39 : vector<2x32xf32>
    %cst_28 = arith.constant 1.000000e+00 : f32
    %41 = vector.broadcast %cst_28 : f32 to vector<2x32xf32>
    %42 = arith.subf %40, %41 : vector<2x32xf32>
    %43 = arith.select %37, %35, %42 : vector<2x32xi1>, vector<2x32xf32>
    %c0_29 = arith.constant 0 : index
    %c0_30 = arith.constant 0 : index
    %44 = vector.load %arg10[%c0_29, %c0_30] : memref<1x32xf32, #tpu.memory_space<vmem>>, vector<1x32xf32>
    %45 = vector.broadcast %44 : vector<1x32xf32> to vector<2x32xf32>
    %46 = arith.mulf %43, %45 : vector<2x32xf32>
    %cst_31 = arith.constant dense<0.000000e+00> : vector<2xf32>
    %47 = vector.multi_reduction <add>, %46, %cst_31 [1] : vector<2x32xf32> to vector<2xf32>
    %48 = vector.shape_cast %47 : vector<2xf32> to vector<2x1xf32>
    %c0_32 = arith.constant 0 : index
    %c0_33 = arith.constant 0 : index
    %49 = vector.load %arg11[%c0_32, %c0_33] : memref<1x1xf32, #tpu.memory_space<vmem>>, vector<1x1xf32>
    %50 = vector.broadcast %49 : vector<1x1xf32> to vector<2x1xf32>
    %51 = arith.addf %48, %50 : vector<2x1xf32>
    %c0_34 = arith.constant 0 : index
    %c0_35 = arith.constant 0 : index
    %52 = vector.load %arg12[%c0_34, %c0_35] : memref<2x1xf32, #tpu.memory_space<vmem>>, vector<2x1xf32>
    tpu.vector_store %arg12[%c0_34, %c0_35], %51 {strides = array<i32>} : memref<2x1xf32, #tpu.memory_space<vmem>>, vector<2x1xf32>,
    return
  }
  func.func @transform_0(%arg0: i32) -> (i32, i32) {
    %c0_i32 = arith.constant 0 : i32
    %c0_i32_0 = arith.constant 0 : i32
    return %arg0, %c0_i32 : i32, i32
  }
  func.func @transform_1(%arg0: i32) -> (i32, i32) {
    %c0_i32 = arith.constant 0 : i32
    %c0_i32_0 = arith.constant 0 : i32
    return %arg0, %c0_i32 : i32, i32
  }
  func.func @transform_2(%arg0: i32) -> (i32, i32) {
    %c0_i32 = arith.constant 0 : i32
    %c0_i32_0 = arith.constant 0 : i32
    %c0_i32_1 = arith.constant 0 : i32
    return %c0_i32, %c0_i32_0 : i32, i32
  }
  func.func @transform_3(%arg0: i32) -> (i32, i32) {
    %c0_i32 = arith.constant 0 : i32
    %c0_i32_0 = arith.constant 0 : i32
    %c0_i32_1 = arith.constant 0 : i32
    return %c0_i32, %c0_i32_0 : i32, i32
  }
  func.func @transform_4(%arg0: i32) -> (i32, i32) {
    %c0_i32 = arith.constant 0 : i32
    %c0_i32_0 = arith.constant 0 : i32
    %c0_i32_1 = arith.constant 0 : i32
    return %c0_i32, %c0_i32_0 : i32, i32
  }
  func.func @transform_5(%arg0: i32) -> (i32, i32) {
    %c0_i32 = arith.constant 0 : i32
    %c0_i32_0 = arith.constant 0 : i32
    %c0_i32_1 = arith.constant 0 : i32
    return %c0_i32, %c0_i32_0 : i32, i32
  }
  func.func @transform_6(%arg0: i32) -> (i32, i32) {
    %c0_i32 = arith.constant 0 : i32
    %c0_i32_0 = arith.constant 0 : i32
    %c0_i32_1 = arith.constant 0 : i32
    return %c0_i32, %c0_i32_0 : i32, i32
  }
  func.func @transform_7(%arg0: i32) -> (i32, i32) {
    %c0_i32 = arith.constant 0 : i32
    %c0_i32_0 = arith.constant 0 : i32
    %c0_i32_1 = arith.constant 0 : i32
    return %c0_i32, %c0_i32_0 : i32, i32
  }
  func.func @transform_8(%arg0: i32) -> (i32, i32) {
    %c0_i32 = arith.constant 0 : i32
    %c0_i32_0 = arith.constant 0 : i32
    %c0_i32_1 = arith.constant 0 : i32
    return %c0_i32, %c0_i32_0 : i32, i32
  }
  func.func @transform_9(%arg0: i32) -> (i32, i32) {
    %c0_i32 = arith.constant 0 : i32
    %c0_i32_0 = arith.constant 0 : i32
    %c0_i32_1 = arith.constant 0 : i32
    return %c0_i32, %c0_i32_0 : i32, i32
  }
  func.func @transform_10(%arg0: i32) -> (i32, i32) {
    %c0_i32 = arith.constant 0 : i32
    %c0_i32_0 = arith.constant 0 : i32
    %c0_i32_1 = arith.constant 0 : i32
    return %c0_i32, %c0_i32_0 : i32, i32
  }
  func.func @transform_11(%arg0: i32) -> (i32, i32) {
    %c0_i32 = arith.constant 0 : i32
    %c0_i32_0 = arith.constant 0 : i32
    return %arg0, %c0_i32 : i32, i32
  }
}

</mosaic_0001>

<llo_original>
// kernel: tpu_custom_call.1
$region0: #{tpu_custom_call.1}
  #allocation0 [shape = 'u32[]', space=smem, size = 0x4, offset = 0x4, fixed_abs, tag = 'smem constant byte address 0x4 - core index']
  #allocation1 [shape = 'u32[144,128]{1,0:T(1,128)}', space=vmem, size = 0x12000, scoped, tag = 'internal scratch']
  #allocation2 [shape = 'f32[1,1]{1,0:T(1,128)S(1)}', space=vmem, size = 0x200, scoped, tag = 'scoped memory for tpu_custom_call.1']
  %s0 = inlined_call_operand.vmem [shape: f32[2,8], index: 0, kind: input, shape index: {}]
  %s1 = inlined_call_operand.hbm [shape: f32[2,24], index: 1, kind: input, shape index: {}]
  %s2 = inlined_call_operand.vmem [shape: f32[8,32], index: 2, kind: input, shape index: {}]
  %s3 = inlined_call_operand.hbm [shape: f32[24,32], index: 3, kind: input, shape index: {}]
  %s4 = inlined_call_operand.vmem [shape: f32[1,32], index: 4, kind: input, shape index: {}]
  %s5 = inlined_call_operand.hbm [shape: f32[32,32], index: 5, kind: input, shape index: {}]
  %s6 = inlined_call_operand.vmem [shape: f32[1,32], index: 6, kind: input, shape index: {}]
  %s7 = inlined_call_operand.hbm [shape: f32[32,32], index: 7, kind: input, shape index: {}]
  %s8 = inlined_call_operand.vmem [shape: f32[1,32], index: 8, kind: input, shape index: {}]
  %s9 = inlined_call_operand.vmem [shape: f32[1,32], index: 9, kind: input, shape index: {}]
  %s10 = inlined_call_operand.<no memory space> [shape: f32[1,1], index: 10, kind: input, shape index: {}]
  %s11 = inlined_call_operand.vmem [shape: f32[2,1], index: 11, kind: output, shape index: {}]
  %s12 = sld [smem:[#allocation0]]
  $region70: #{tpu_custom_call.1} parent=0
    _
  %s14 = ssub.s32 1, %s12
  %s15 = scalar_select 0, %s14, %s12
  %v16 = vstv %s10
  %17 = vst [vmem:[#allocation2] sm:$0x1] %v16
  $region1: #{tpu_custom_call.1} parent=0
    #allocation3 [shape = 'u8[1024]{0}', space=vmem, size = 0x400, scoped, tag = 'input window, operand 1, single buffered']
    #allocation4 [shape = 's32[1]{0}', space=sflag, size = 0x4, scoped, tag = 'scoped memory for tpu_custom_call.1']
    #allocation5 [shape = 'u8[12288]{0}', space=vmem, size = 0x3000, scoped, tag = 'input window, operand 3, single buffered']
    #allocation6 [shape = 's32[1]{0}', space=sflag, size = 0x4, scoped, tag = 'scoped memory for tpu_custom_call.1']
    #allocation7 [shape = 'u8[16384]{0}', space=vmem, size = 0x4000, scoped, tag = 'input window, operand 5, single buffered']
    #allocation8 [shape = 'u8[16384]{0}', space=vmem, size = 0x4000, scoped, tag = 'input window, operand 7, single buffered']
    #allocation9 [shape = 's32[1]{0}', space=sflag, size = 0x4, scoped, tag = 'scoped memory for tpu_custom_call.1']
    %18 = vsyncpa [#allocation4], 0
    %19 = vsyncpa [#allocation6], 0
    %20 = vsyncpa [#allocation9], 0
    // Predicated region
    $region2: #{tpu_custom_call.1} parent=1 // pred_check
      _
    $region3: #{tpu_custom_call.1} parent=1 // pred_check_branch
      %22 = sbr.rel (0) target = $region5
    $region4: #{tpu_custom_call.1} parent=1 // pred_region
      _
    $region5: #{tpu_custom_call.1} parent=1 // pred_fallthru
      _
    // Predicated region
    $region6: #{tpu_custom_call.1} parent=1 // pred_check
      _
    $region7: #{tpu_custom_call.1} parent=1 // pred_check_branch
      %24 = sbr.rel (0) target = $region9
    $region8: #{tpu_custom_call.1} parent=1 // pred_region
      %s26 = ssub.s32 32, 32
      %27 = vsyncadd [#allocation4], %s26
      %s29 = sshll.u32 [#allocation3], 4
      %s30 = int_to_ptr.vmem [resolvable:$true] %s29
      %32 = dma.hbm_to_vmem [thread:$0]  %s1, 32, %s30, [#allocation4]
    $region9: #{tpu_custom_call.1} parent=1 // pred_fallthru
      _
    // Predicated region
    $region10: #{tpu_custom_call.1} parent=1 // pred_check
      _
    $region11: #{tpu_custom_call.1} parent=1 // pred_check_branch
      %34 = sbr.rel (0) target = $region13
    $region12: #{tpu_custom_call.1} parent=1 // pred_region
      _
    $region13: #{tpu_custom_call.1} parent=1 // pred_fallthru
      _
    // Predicated region
    $region14: #{tpu_custom_call.1} parent=1 // pred_check
      _
    $region15: #{tpu_custom_call.1} parent=1 // pred_check_branch
      %36 = sbr.rel (0) target = $region17
    $region16: #{tpu_custom_call.1} parent=1 // pred_region
      %s38 = ssub.s32 384, 384
      %39 = vsyncadd [#allocation6], %s38
      %s40 = sshll.u32 [#allocation5], 4
      %s41 = int_to_ptr.vmem [resolvable:$true] %s40
      %46 = dma.hbm_to_vmem [thread:$0]  %s3, 384, %s41, [#allocation6], 128, 128, 8
    $region17: #{tpu_custom_call.1} parent=1 // pred_fallthru
      _
    // Predicated region
    $region18: #{tpu_custom_call.1} parent=1 // pred_check
      _
    $region19: #{tpu_custom_call.1} parent=1 // pred_check_branch
      %48 = sbr.rel (0) target = $region21
    $region20: #{tpu_custom_call.1} parent=1 // pred_region
      _
    $region21: #{tpu_custom_call.1} parent=1 // pred_fallthru
      _
    // Predicated region
    $region22: #{tpu_custom_call.1} parent=1 // pred_check
      _
    $region23: #{tpu_custom_call.1} parent=1 // pred_check_branch
      %50 = sbr.rel (0) target = $region25
    $region24: #{tpu_custom_call.1} parent=1 // pred_region
      %s52 = ssub.s32 512, 512
      %53 = vsyncadd [#allocation6], %s52
      %s54 = sshll.u32 [#allocation7], 4
      %s55 = int_to_ptr.vmem [resolvable:$true] %s54
      %60 = dma.hbm_to_vmem [thread:$0]  %s5, 512, %s55, [#allocation6], 128, 128, 8
    $region25: #{tpu_custom_call.1} parent=1 // pred_fallthru
      _
    // Predicated region
    $region26: #{tpu_custom_call.1} parent=1 // pred_check
      _
    $region27: #{tpu_custom_call.1} parent=1 // pred_check_branch
      %62 = sbr.rel (0) target = $region29
    $region28: #{tpu_custom_call.1} parent=1 // pred_region
      _
    $region29: #{tpu_custom_call.1} parent=1 // pred_fallthru
      _
    // Predicated region
    $region30: #{tpu_custom_call.1} parent=1 // pred_check
      _
    $region31: #{tpu_custom_call.1} parent=1 // pred_check_branch
      %64 = sbr.rel (0) target = $region33
    $region32: #{tpu_custom_call.1} parent=1 // pred_region
      %s66 = ssub.s32 512, 512
      %67 = vsyncadd [#allocation9], %s66
      %s68 = sshll.u32 [#allocation8], 4
      %s69 = int_to_ptr.vmem [resolvable:$true] %s68
      %74 = dma.hbm_to_vmem [thread:$0]  %s7, 512, %s69, [#allocation9], 128, 128, 8
    $region33: #{tpu_custom_call.1} parent=1 // pred_fallthru
      _
    // Predicated region
    $region34: #{tpu_custom_call.1} parent=1 // pred_check
      _
    $region35: #{tpu_custom_call.1} parent=1 // pred_check_branch
      %76 = sbr.rel (0) target = $region37
    $region36: #{tpu_custom_call.1} parent=1 // pred_region
      _
    $region37: #{tpu_custom_call.1} parent=1 // pred_fallthru
      _
    // Predicated region
    $region38: #{tpu_custom_call.1} parent=1 // pred_check
      _
    $region39: #{tpu_custom_call.1} parent=1 // pred_check_branch
      %78 = sbr.rel (0) target = $region41
    $region40: #{tpu_custom_call.1} parent=1 // pred_region
      _
    $region41: #{tpu_custom_call.1} parent=1 // pred_fallthru
      _
    // Predicated region
    $region42: #{tpu_custom_call.1} parent=1 // pred_check
      _
    $region43: #{tpu_custom_call.1} parent=1 // pred_check_branch
      %80 = sbr.rel (0) target = $region45
    $region44: #{tpu_custom_call.1} parent=1 // pred_region
      _
    $region45: #{tpu_custom_call.1} parent=1 // pred_fallthru
      _
    // Predicated region
    $region46: #{tpu_custom_call.1} parent=1 // pred_check
      _
    $region47: #{tpu_custom_call.1} parent=1 // pred_check_branch
      %82 = sbr.rel (0) target = $region49
    $region48: #{tpu_custom_call.1} parent=1 // pred_region
      %83 = dma.done [#allocation4], 32
    $region49: #{tpu_custom_call.1} parent=1 // pred_fallthru
      _
    // Predicated region
    $region50: #{tpu_custom_call.1} parent=1 // pred_check
      _
    $region51: #{tpu_custom_call.1} parent=1 // pred_check_branch
      %85 = sbr.rel (0) target = $region53
    $region52: #{tpu_custom_call.1} parent=1 // pred_region
      %86 = dma.done [#allocation6], 384
    $region53: #{tpu_custom_call.1} parent=1 // pred_fallthru
      _
    // Predicated region
    $region54: #{tpu_custom_call.1} parent=1 // pred_check
      _
    $region55: #{tpu_custom_call.1} parent=1 // pred_check_branch
      %88 = sbr.rel (0) target = $region57
    $region56: #{tpu_custom_call.1} parent=1 // pred_region
      %89 = dma.done [#allocation6], 512
    $region57: #{tpu_custom_call.1} parent=1 // pred_fallthru
      _
    // Predicated region
    $region58: #{tpu_custom_call.1} parent=1 // pred_check
      _
    $region59: #{tpu_custom_call.1} parent=1 // pred_check_branch
      %91 = sbr.rel (0) target = $region61
    $region60: #{tpu_custom_call.1} parent=1 // pred_region
      %92 = dma.done [#allocation9], 512
    $region61: #{tpu_custom_call.1} parent=1 // pred_fallthru
      _
    %v93 = vld [vmem:[%s0] sm:$0x3]
    %v94 = vld [vmem:[%s2] sm:$0xff]
    %v95 = vld [vmem:[#allocation3] sm:$0x3]
    %v96 = vld [vmem:[#allocation5] sm:$0xff]
    %v97 = vld [vmem:[#allocation5 + $0x8] sm:$0xff]
    %v98 = vld [vmem:[#allocation5 + $0x10] sm:$0xff]
    %vm99 = vcmask 195584
    %v101 = vsel %vm99, %v95, 0
    %103 = vmatprep.subr.mxu0 0.0
    %104 = vmatpush1.msra.mxu0 %v96
    %105 = vmatprep.subr.mxu0 0.0
    %106 = vmatpush1.msra.mxu0 %v97
    %107 = vmatprep.subr.mxu0 0.0
    %108 = vmatpush1.msra.mxu0 %v98
    %109 = vmatprep.subr.mxu0 0.0
    %110 = vmatpush1.msra.mxu0 0.0
    %111 = vmatprep.subr.mxu0 0.0
    %112 = vmatpush1.msra.mxu0 0.0
    %113 = vmatprep.subr.mxu0 0.0
    %114 = vmatpush1.msra.mxu0 0.0
    %115 = vmatprep.subr.mxu0 0.0
    %116 = vmatpush1.msra.mxu0 0.0
    %117 = vmatprep.subr.mxu0 0.0
    %118 = vmatpush1.msra.mxu0 0.0
    %119 = vmatprep.subr.mxu0 0.0
    %120 = vmatpush1.msra.mxu0 0.0
    %121 = vmatprep.subr.mxu0 0.0
    %122 = vmatpush1.msra.mxu0 0.0
    %123 = vmatprep.subr.mxu0 0.0
    %124 = vmatpush1.msra.mxu0 0.0
    %125 = vmatprep.subr.mxu0 0.0
    %126 = vmatpush1.msra.mxu0 0.0
    %127 = vmatprep.subr.mxu0 0.0
    %128 = vmatpush1.msra.mxu0 0.0
    %129 = vmatprep.subr.mxu0 0.0
    %130 = vmatpush1.msra.mxu0 0.0
    %131 = vmatprep.subr.mxu0 0.0
    %132 = vmatpush1.msra.mxu0 0.0
    %133 = vmatprep.subr.mxu0 0.0
    %134 = vmatpush1.msra.mxu0 0.0
    %135 = vmatprep.subr.mxu0 0.0
    %136 = vmatpush1.msra.mxu0 0.0
    %137 = vmatprep.subr.mxu0 0.0
    %138 = vmatpush1.msra.mxu0 0.0
    %139 = vmatprep.subr.mxu0 0.0
    %140 = vmatpush1.msra.mxu0 0.0
    %141 = vmatprep.subr.mxu0 0.0
    %142 = vmatpush1.msra.mxu0 0.0
    %143 = vmatprep.subr.mxu0 0.0
    %144 = vmatpush1.msra.mxu0 0.0
    %145 = vmatprep.subr.mxu0 0.0
    %146 = vmatpush1.msra.mxu0 0.0
    %147 = vmatprep.subr.mxu0 0.0
    %148 = vmatpush1.msra.mxu0 0.0
    %149 = vmatprep.subr.mxu0 0.0
    %150 = vmatpush1.msra.mxu0 0.0
    %151 = vmatprep.subr.mxu0 0.0
    %152 = vmatpush1.msra.mxu0 0.0
    %153 = vmatprep.subr.mxu0 0.0
    %154 = vmatpush1.msra.mxu0 0.0
    %155 = vmatprep.subr.mxu0 0.0
    %156 = vmatpush1.msra.mxu0 0.0
    %157 = vmatprep.subr.mxu0 0.0
    %158 = vmatpush1.msra.mxu0 0.0
    %159 = vmatprep.subr.mxu0 0.0
    %160 = vmatpush1.msra.mxu0 0.0
    %161 = vmatprep.subr.mxu0 0.0
    %162 = vmatpush1.msra.mxu0 0.0
    %163 = vmatprep.subr.mxu0 0.0
    %164 = vmatpush1.msra.mxu0 0.0
    %165 = vmatprep.subr.mxu0 0.0
    %166 = vmatpush1.msra.mxu0 0.0
    %167 = vmatprep.mubr.f32.mxu0 0.0
    %168 = vmatmul.mubr.f32.gmra.mrb[0].mxu0 %v101
    %v169 = vpop.f32.mrb[0].mxu0
    %v170 = vadd.f32 0.0, %v169
    %v171 = vpop.f32.mrb[0].mxu0
    %172 = vdwg.mxu0
    %vm173 = vcmask 64512
    %v175 = vsel %vm173, %v93, 0
    %177 = vmatprep.subr.mxu0 0.0
    %178 = vmatpush1.msra.mxu0 %v94
    %179 = vmatprep.subr.mxu0 0.0
    %180 = vmatpush1.msra.mxu0 0.0
    %181 = vmatprep.subr.mxu0 0.0
    %182 = vmatpush1.msra.mxu0 0.0
    %183 = vmatprep.subr.mxu0 0.0
    %184 = vmatpush1.msra.mxu0 0.0
    %185 = vmatprep.subr.mxu0 0.0
    %186 = vmatpush1.msra.mxu0 0.0
    %187 = vmatprep.subr.mxu0 0.0
    %188 = vmatpush1.msra.mxu0 0.0
    %189 = vmatprep.subr.mxu0 0.0
    %190 = vmatpush1.msra.mxu0 0.0
    %191 = vmatprep.subr.mxu0 0.0
    %192 = vmatpush1.msra.mxu0 0.0
    %193 = vmatprep.subr.mxu0 0.0
    %194 = vmatpush1.msra.mxu0 0.0
    %195 = vmatprep.subr.mxu0 0.0
    %196 = vmatpush1.msra.mxu0 0.0
    %197 = vmatprep.subr.mxu0 0.0
    %198 = vmatpush1.msra.mxu0 0.0
    %199 = vmatprep.subr.mxu0 0.0
    %200 = vmatpush1.msra.mxu0 0.0
    %201 = vmatprep.subr.mxu0 0.0
    %202 = vmatpush1.msra.mxu0 0.0
    %203 = vmatprep.subr.mxu0 0.0
    %204 = vmatpush1.msra.mxu0 0.0
    %205 = vmatprep.subr.mxu0 0.0
    %206 = vmatpush1.msra.mxu0 0.0
    %207 = vmatprep.subr.mxu0 0.0
    %208 = vmatpush1.msra.mxu0 0.0
    %209 = vmatprep.subr.mxu0 0.0
    %210 = vmatpush1.msra.mxu0 0.0
    %211 = vmatprep.subr.mxu0 0.0
    %212 = vmatpush1.msra.mxu0 0.0
    %213 = vmatprep.subr.mxu0 0.0
    %214 = vmatpush1.msra.mxu0 0.0
    %215 = vmatprep.subr.mxu0 0.0
    %216 = vmatpush1.msra.mxu0 0.0
    %217 = vmatprep.subr.mxu0 0.0
    %218 = vmatpush1.msra.mxu0 0.0
    %219 = vmatprep.subr.mxu0 0.0
    %220 = vmatpush1.msra.mxu0 0.0
    %221 = vmatprep.subr.mxu0 0.0
    %222 = vmatpush1.msra.mxu0 0.0
    %223 = vmatprep.subr.mxu0 0.0
    %224 = vmatpush1.msra.mxu0 0.0
    %225 = vmatprep.subr.mxu0 0.0
    %226 = vmatpush1.msra.mxu0 0.0
    %227 = vmatprep.subr.mxu0 0.0
    %228 = vmatpush1.msra.mxu0 0.0
    %229 = vmatprep.subr.mxu0 0.0
    %230 = vmatpush1.msra.mxu0 0.0
    %231 = vmatprep.subr.mxu0 0.0
    %232 = vmatpush1.msra.mxu0 0.0
    %233 = vmatprep.subr.mxu0 0.0
    %234 = vmatpush1.msra.mxu0 0.0
    %235 = vmatprep.subr.mxu0 0.0
    %236 = vmatpush1.msra.mxu0 0.0
    %237 = vmatprep.subr.mxu0 0.0
    %238 = vmatpush1.msra.mxu0 0.0
    %239 = vmatprep.subr.mxu0 0.0
    %240 = vmatpush1.msra.mxu0 0.0
    %241 = vmatprep.mubr.f32.mxu0 0.0
    %242 = vmatmul.mubr.f32.gmra.mrb[0].mxu0 %v175
    %v243 = vpop.f32.mrb[0].mxu0
    %v244 = vadd.f32 %v170, %v243
    %v245 = vpop.f32.mrb[0].mxu0
    %246 = vdwg.mxu0
    %v247 = vld [vmem:[%s4] sm:$0x1]
    %v249 = vlaneseq
    %v250 = vshrl.u32 %v249, 7
    %v251 = vsub.s32 0, %v250
    %v252 = vrot.slane %v247, %v251
    %v254 = vadd.f32 %v244, %v252
    %vm255 = vcmp.gt.f32.partialorder %v254, 0.0
    %v256 = vmin.f32 %v254, 0.0
    %v257 = vmul.f32 %v256, 1.442695
    %v258 = vpow.pop %v257
    %v259 = vsub.f32 %v258, 1.0
    %v260 = vsel %vm255, %v254, %v259
    %v261 = vld [vmem:[#allocation7] sm:$0xff]
    %v262 = vld [vmem:[#allocation7 + $0x8] sm:$0xff]
    %v263 = vld [vmem:[#allocation7 + $0x10] sm:$0xff]
    %v264 = vld [vmem:[#allocation7 + $0x18] sm:$0xff]
    %v265 = vld [vmem:[%s6] sm:$0x1]
    %v267 = vlaneseq
    %v268 = vshrl.u32 %v267, 7
    %v269 = vsub.s32 0, %v268
    %v270 = vrot.slane %v265, %v269
    %vm272 = vcmask 261120
    %v274 = vsel %vm272, %v260, 0
    %276 = vmatprep.subr.mxu0 0.0
    %277 = vmatpush1.msra.mxu0 %v261
    %278 = vmatprep.subr.mxu0 0.0
    %279 = vmatpush1.msra.mxu0 %v262
    %280 = vmatprep.subr.mxu0 0.0
    %281 = vmatpush1.msra.mxu0 %v263
    %282 = vmatprep.subr.mxu0 0.0
    %283 = vmatpush1.msra.mxu0 %v264
    %284 = vmatprep.subr.mxu0 0.0
    %285 = vmatpush1.msra.mxu0 0.0
    %286 = vmatprep.subr.mxu0 0.0
    %287 = vmatpush1.msra.mxu0 0.0
    %288 = vmatprep.subr.mxu0 0.0
    %289 = vmatpush1.msra.mxu0 0.0
    %290 = vmatprep.subr.mxu0 0.0
    %291 = vmatpush1.msra.mxu0 0.0
    %292 = vmatprep.subr.mxu0 0.0
    %293 = vmatpush1.msra.mxu0 0.0
    %294 = vmatprep.subr.mxu0 0.0
    %295 = vmatpush1.msra.mxu0 0.0
    %296 = vmatprep.subr.mxu0 0.0
    %297 = vmatpush1.msra.mxu0 0.0
    %298 = vmatprep.subr.mxu0 0.0
    %299 = vmatpush1.msra.mxu0 0.0
    %300 = vmatprep.subr.mxu0 0.0
    %301 = vmatpush1.msra.mxu0 0.0
    %302 = vmatprep.subr.mxu0 0.0
    %303 = vmatpush1.msra.mxu0 0.0
    %304 = vmatprep.subr.mxu0 0.0
    %305 = vmatpush1.msra.mxu0 0.0
    %306 = vmatprep.subr.mxu0 0.0
    %307 = vmatpush1.msra.mxu0 0.0
    %308 = vmatprep.subr.mxu0 0.0
    %309 = vmatpush1.msra.mxu0 0.0
    %310 = vmatprep.subr.mxu0 0.0
    %311 = vmatpush1.msra.mxu0 0.0
    %312 = vmatprep.subr.mxu0 0.0
    %313 = vmatpush1.msra.mxu0 0.0
    %314 = vmatprep.subr.mxu0 0.0
    %315 = vmatpush1.msra.mxu0 0.0
    %316 = vmatprep.subr.mxu0 0.0
    %317 = vmatpush1.msra.mxu0 0.0
    %318 = vmatprep.subr.mxu0 0.0
    %319 = vmatpush1.msra.mxu0 0.0
    %320 = vmatprep.subr.mxu0 0.0
    %321 = vmatpush1.msra.mxu0 0.0
    %322 = vmatprep.subr.mxu0 0.0
    %323 = vmatpush1.msra.mxu0 0.0
    %324 = vmatprep.subr.mxu0 0.0
    %325 = vmatpush1.msra.mxu0 0.0
    %326 = vmatprep.subr.mxu0 0.0
    %327 = vmatpush1.msra.mxu0 0.0
    %328 = vmatprep.subr.mxu0 0.0
    %329 = vmatpush1.msra.mxu0 0.0
    %330 = vmatprep.subr.mxu0 0.0
    %331 = vmatpush1.msra.mxu0 0.0
    %332 = vmatprep.subr.mxu0 0.0
    %333 = vmatpush1.msra.mxu0 0.0
    %334 = vmatprep.subr.mxu0 0.0
    %335 = vmatpush1.msra.mxu0 0.0
    %336 = vmatprep.subr.mxu0 0.0
    %337 = vmatpush1.msra.mxu0 0.0
    %338 = vmatprep.subr.mxu0 0.0
    %339 = vmatpush1.msra.mxu0 0.0
    %340 = vmatprep.mubr.f32.mxu0 0.0
    %341 = vmatmul.mubr.f32.gmra.mrb[0].mxu0 %v274
    %v342 = vpop.f32.mrb[0].mxu0
    %v343 = vadd.f32 %v270, %v342
    %v344 = vpop.f32.mrb[0].mxu0
    %345 = vdwg.mxu0
    %vm346 = vcmp.gt.f32.partialorder %v343, 0.0
    %v347 = vmin.f32 %v343, 0.0
    %v348 = vmul.f32 %v347, 1.442695
    %v349 = vpow.pop %v348
    %v350 = vsub.f32 %v349, 1.0
    %v351 = vsel %vm346, %v343, %v350
    %v352 = vld [vmem:[#allocation8] sm:$0xff]
    %v353 = vld [vmem:[#allocation8 + $0x8] sm:$0xff]
    %v354 = vld [vmem:[#allocation8 + $0x10] sm:$0xff]
    %v355 = vld [vmem:[#allocation8 + $0x18] sm:$0xff]
    %v356 = vld [vmem:[%s8] sm:$0x1]
    %v358 = vlaneseq
    %v359 = vshrl.u32 %v358, 7
    %v360 = vsub.s32 0, %v359
    %v361 = vrot.slane %v356, %v360
    %v364 = vsel %vm272, %v351, 0
    %366 = vmatprep.subr.mxu0 0.0
    %367 = vmatpush1.msra.mxu0 %v352
    %368 = vmatprep.subr.mxu0 0.0
    %369 = vmatpush1.msra.mxu0 %v353
    %370 = vmatprep.subr.mxu0 0.0
    %371 = vmatpush1.msra.mxu0 %v354
    %372 = vmatprep.subr.mxu0 0.0
    %373 = vmatpush1.msra.mxu0 %v355
    %374 = vmatprep.subr.mxu0 0.0
    %375 = vmatpush1.msra.mxu0 0.0
    %376 = vmatprep.subr.mxu0 0.0
    %377 = vmatpush1.msra.mxu0 0.0
    %378 = vmatprep.subr.mxu0 0.0
    %379 = vmatpush1.msra.mxu0 0.0
    %380 = vmatprep.subr.mxu0 0.0
    %381 = vmatpush1.msra.mxu0 0.0
    %382 = vmatprep.subr.mxu0 0.0
    %383 = vmatpush1.msra.mxu0 0.0
    %384 = vmatprep.subr.mxu0 0.0
    %385 = vmatpush1.msra.mxu0 0.0
    %386 = vmatprep.subr.mxu0 0.0
    %387 = vmatpush1.msra.mxu0 0.0
    %388 = vmatprep.subr.mxu0 0.0
    %389 = vmatpush1.msra.mxu0 0.0
    %390 = vmatprep.subr.mxu0 0.0
    %391 = vmatpush1.msra.mxu0 0.0
    %392 = vmatprep.subr.mxu0 0.0
    %393 = vmatpush1.msra.mxu0 0.0
    %394 = vmatprep.subr.mxu0 0.0
    %395 = vmatpush1.msra.mxu0 0.0
    %396 = vmatprep.subr.mxu0 0.0
    %397 = vmatpush1.msra.mxu0 0.0
    %398 = vmatprep.subr.mxu0 0.0
    %399 = vmatpush1.msra.mxu0 0.0
    %400 = vmatprep.subr.mxu0 0.0
    %401 = vmatpush1.msra.mxu0 0.0
    %402 = vmatprep.subr.mxu0 0.0
    %403 = vmatpush1.msra.mxu0 0.0
    %404 = vmatprep.subr.mxu0 0.0
    %405 = vmatpush1.msra.mxu0 0.0
    %406 = vmatprep.subr.mxu0 0.0
    %407 = vmatpush1.msra.mxu0 0.0
    %408 = vmatprep.subr.mxu0 0.0
    %409 = vmatpush1.msra.mxu0 0.0
    %410 = vmatprep.subr.mxu0 0.0
    %411 = vmatpush1.msra.mxu0 0.0
    %412 = vmatprep.subr.mxu0 0.0
    %413 = vmatpush1.msra.mxu0 0.0
    %414 = vmatprep.subr.mxu0 0.0
    %415 = vmatpush1.msra.mxu0 0.0
    %416 = vmatprep.subr.mxu0 0.0
    %417 = vmatpush1.msra.mxu0 0.0
    %418 = vmatprep.subr.mxu0 0.0
    %419 = vmatpush1.msra.mxu0 0.0
    %420 = vmatprep.subr.mxu0 0.0
    %421 = vmatpush1.msra.mxu0 0.0
    %422 = vmatprep.subr.mxu0 0.0
    %423 = vmatpush1.msra.mxu0 0.0
    %424 = vmatprep.subr.mxu0 0.0
    %425 = vmatpush1.msra.mxu0 0.0
    %426 = vmatprep.subr.mxu0 0.0
    %427 = vmatpush1.msra.mxu0 0.0
    %428 = vmatprep.subr.mxu0 0.0
    %429 = vmatpush1.msra.mxu0 0.0
    %430 = vmatprep.mubr.f32.mxu0 0.0
    %431 = vmatmul.mubr.f32.gmra.mrb[0].mxu0 %v364
    %v432 = vpop.f32.mrb[0].mxu0
    %v433 = vadd.f32 %v361, %v432
    %v434 = vpop.f32.mrb[0].mxu0
    %435 = vdwg.mxu0
    %vm436 = vcmp.gt.f32.partialorder %v433, 0.0
    %v437 = vmin.f32 %v433, 0.0
    %v438 = vmul.f32 %v437, 1.442695
    %v439 = vpow.pop %v438
    %v440 = vsub.f32 %v439, 1.0
    %v441 = vsel %vm436, %v433, %v440
    %v442 = vld [vmem:[%s9] sm:$0x1]
    %v444 = vlaneseq
    %v445 = vshrl.u32 %v444, 7
    %v446 = vsub.s32 0, %v445
    %v447 = vrot.slane %v442, %v446
    %v449 = vmul.f32 %v441, %v447
    %vm450 = vcmask 254976
    %v451 = vsel %vm450, %v449, 0.0
    %452 = vadd.xlane.f32.xlu0 %v451
    %v453 = vpop.xlane.xlu0 %452
    %v454 = vld [vmem:[#allocation2] sm:$0x1]
    %v456 = vlaneseq
    %v457 = vshrl.u32 %v456, 7
    %v458 = vsub.s32 0, %v457
    %v459 = vrot.slane %v454, %v458
    %v461 = vadd.f32 %v453, %v459
    %vm462 = vcmask 1024
    %463 = vst.msk [vmem:[%s11] sm:$0x3] %vm462, %v461
    // Predicated region
    $region62: #{tpu_custom_call.1} parent=1 // pred_check
      _
    $region63: #{tpu_custom_call.1} parent=1 // pred_check_branch
      %465 = sbr.rel (0) target = $region65
    $region64: #{tpu_custom_call.1} parent=1 // pred_region
      _
    $region65: #{tpu_custom_call.1} parent=1 // pred_fallthru
      _
    // Predicated region
    $region66: #{tpu_custom_call.1} parent=1 // pred_check
      _
    $region67: #{tpu_custom_call.1} parent=1 // pred_check_branch
      %467 = sbr.rel (0) target = $region69
    $region68: #{tpu_custom_call.1} parent=1 // pred_region
      _
    $region69: #{tpu_custom_call.1} parent=1 // pred_fallthru
      _
    %468 = vsyncpa [#allocation4], 1
    %469 = vsyncpa [#allocation6], 1
    %470 = vsyncpa [#allocation9], 1

</llo_original>
